<compile_context>
chip_gen: v5e
topology: v5e:2x2
jax: 0.10.0
libtpu: 0.0.40
codegen_flags: <defaults>
</compile_context>

<pallas_src>
import jax
import jax.numpy as jnp
from jax import lax
from jax.experimental import pallas as pl
from jax.experimental.pallas import tpu as pltpu

EPS = 1e-5  # PyTorch GroupNorm default eps


# --------------------------------- kernel ---------------------------------
def _make_kernel(C, HW, num_groups, offs):
    """Build the per-grid-step kernel body (all sizes / SMEM offsets static)."""
    gs = C // num_groups
    inv_n = 1.0 / float(gs * HW)
    W1, B1, G1, BE1, W2, B2, G2, BE2 = offs

    def kernel(p_ref, x_ref, o_ref):
        # p_ref : SMEM (P,) f32   packed w1, b1, g1, be1, w2, b2, g2, be2
        # x_ref : VMEM (bb, C, HW)   channels on sublanes, HW lane-dense
        # o_ref : VMEM (bb, C, HW)
        xs = [x_ref[:, c, :] for c in range(C)]        # C lane-dense (bb, HW) rows

        def conv1x1(chans, w_off, b_off):
            # out[co] = sum_ci w[co, ci] * chans[ci] + b[co]   (VPU FMAs, no MXU)
            outs = []
            for co in range(C):
                acc = chans[0] * p_ref[w_off + co * C]
                for ci in range(1, C):
                    acc = acc + chans[ci] * p_ref[w_off + co * C + ci]
                outs.append(acc + p_ref[b_off + co])
            return outs

        def groupnorm(chans, g_off, be_off):
            outs = [None] * C
            for g in range(num_groups):
                cs = list(range(g * gs, (g + 1) * gs))
                s = chans[cs[0]]
                for c in cs[1:]:
                    s = s + chans[c]
                mu = jnp.sum(s, axis=-1, keepdims=True) * inv_n        # (bb, 1)
                dev = [chans[c] - mu for c in cs]
                ssq = dev[0] * dev[0]
                for d in dev[1:]:
                    ssq = ssq + d * d
                var = jnp.sum(ssq, axis=-1, keepdims=True) * inv_n     # (bb, 1)
                rstd = lax.rsqrt(var + EPS)
                for j, c in enumerate(cs):
                    outs[c] = dev[j] * rstd * p_ref[g_off + c] + p_ref[be_off + c]
            return outs

        # stem: conv -> GN -> ReLU -> conv -> GN ; then residual + ReLU
        h = conv1x1(xs, W1, B1)
        h = groupnorm(h, G1, BE1)
        h = [jnp.maximum(v, 0.0) for v in h]

        y = conv1x1(h, W2, B2)
        y = groupnorm(y, G2, BE2)

        for c in range(C):
            o_ref[:, c, :] = jnp.maximum(y[c] + xs[c], 0.0)

    return kernel


# --------------------------------- wrapper ---------------------------------
def _choose_blocking(n, per_image_bytes, target_step_bytes=2 << 20):
    """Images per grid step from a byte budget; keep >= 2 grid steps when possible."""
    bb = max(1, min(n, target_step_bytes // max(per_image_bytes, 1)))
    if n >= 2:
        bb = min(bb, -(-n // 2))            # ensure at least 2 pipelined steps
    num_blocks = -(-n // bb)
    return int(bb), int(num_blocks)


def resnet_block_gn_forward(x_nchw, params, *, kernel_size=1, dilation=(1, 1),
                            group_channel=8):
    """x_nchw: (N, C, H, W) float32 -> (N, C, H, W) float32."""
    # TODO(synk): kernel_size > 1 (dilated taps) would need in-kernel shifted-tap
    # accumulation (pltpu.roll along the HW lane axis + boundary masks); GEFU's
    # network.py only instantiates ResnetBlockGn with kernel_size=1.
    assert kernel_size == 1 and tuple(dilation) == (1, 1)

    N, C, H, W = x_nchw.shape
    HW = H * W
    num_groups = int(max(1, C / group_channel))
    assert C % num_groups == 0

    # Pack every parameter into one flat SMEM vector (scalar-broadcast reads).
    pieces = [params["w1"].reshape(-1), params["b1"], params["g1"], params["be1"],
              params["w2"].reshape(-1), params["b2"], params["g2"], params["be2"]]
    offs, cur = [], 0
    for piece in pieces:
        offs.append(cur)
        cur += piece.size
    flat = jnp.concatenate(pieces).astype(jnp.float32)

    bb, num_blocks = _choose_blocking(N, C * HW * 4)
    n_pad = bb * num_blocks

    # NCHW is already channels-on-sublane / HW-on-lane; flattening spatial is free.
    x = x_nchw.reshape(N, C, HW).astype(jnp.float32)
    if n_pad != N:
        x = jnp.pad(x, ((0, n_pad - N), (0, 0), (0, 0)))

    step_bytes = 2 * bb * C * HW * 4                    # in + out tile per grid step
    vmem_limit = int(max(16 << 20, min(48 << 20, 8 * step_bytes)))

    kernel = _make_kernel(C, HW, num_groups, tuple(offs))

    out = pl.pallas_call(
        kernel,
        out_shape=jax.ShapeDtypeStruct((n_pad, C, HW), jnp.float32),
        grid=(num_blocks,),
        in_specs=[
            pl.BlockSpec(memory_space=pltpu.MemorySpace.SMEM),      # params (scalars)
            pl.BlockSpec((bb, C, HW), lambda b: (b, 0, 0)),         # activations
        ],
        out_specs=pl.BlockSpec((bb, C, HW), lambda b: (b, 0, 0)),
        compiler_params=pltpu.CompilerParams(
            dimension_semantics=("parallel",),
            vmem_limit_bytes=vmem_limit),
    )(flat, x)

    return out[:N].reshape(N, C, H, W)


# ----------------------- deterministic parameter setup -----------------------
def init_params(key, C):
    ks = jax.random.split(key, 8)
    p = {}
    p["w1"] = 0.3 * jax.random.normal(ks[0], (C, C), jnp.float32)   # (c_out, c_in)
    p["b1"] = 0.05 * jax.random.normal(ks[1], (C,), jnp.float32)
    p["g1"] = 1.0 + 0.1 * jax.random.normal(ks[2], (C,), jnp.float32)
    p["be1"] = 0.05 * jax.random.normal(ks[3], (C,), jnp.float32)
    p["w2"] = 0.3 * jax.random.normal(ks[4], (C, C), jnp.float32)
    p["b2"] = 0.05 * jax.random.normal(ks[5], (C,), jnp.float32)
    p["g2"] = 1.0 + 0.1 * jax.random.normal(ks[6], (C,), jnp.float32)
    p["be2"] = 0.05 * jax.random.normal(ks[7], (C,), jnp.float32)
    return p


# ----------------------- pure-JAX reference (for validation) -----------------------
def reference_forward(x_nchw, p, group_channel=8):
    C = x_nchw.shape[1]
    num_groups = int(max(1, C / group_channel))

    def gn(y, gamma, beta):
        n, c, h, w = y.shape
        yg = y.reshape(n, num_groups, c // num_groups, h, w)
        m = jnp.mean(yg, axis=(2, 3, 4), keepdims=True)
        v = jnp.mean((yg - m) ** 2, axis=(2, 3, 4), keepdims=True)
        yn = ((yg - m) * lax.rsqrt(v + EPS)).reshape(n, c, h, w)
        return yn * gamma[None, :, None, None] + beta[None, :, None, None]

    def conv1x1(y, w, b):
        return (jnp.einsum("nchw,oc->nohw", y, w,
                           precision=lax.Precision.HIGHEST)
                + b[None, :, None, None])

    h = jnp.maximum(gn(conv1x1(x_nchw, p["w1"], p["b1"]), p["g1"], p["be1"]), 0.0)
    y = gn(conv1x1(h, p["w2"], p["b2"]), p["g2"], p["be2"])
    return jnp.maximum(y + x_nchw, 0.0)


if __name__ == "__main__":
    key = jax.random.PRNGKey(0)
    kx, kp = jax.random.split(key)

    N, C, H, W = 2, 4, 16, 16
    x = jax.random.normal(kx, (N, C, H, W), jnp.float32)
    params = init_params(kp, C)

    out = jax.block_until_ready(resnet_block_gn_forward(x, params))
    assert out.shape == (N, C, H, W), out.shape

    ref = reference_forward(x, params)
    err = float(jnp.max(jnp.abs(out - ref)))
    if err < 5e-4:
        print("KERNEL_OK")
    else:
        print(f"MISMATCH max_abs_err={err}")
</pallas_src>

<mosaic_0001>
module attributes {stable_mosaic.version = 11 : i64} {
  func.func @kernel(%arg0: i32, %arg1: memref<56xf32, #tpu.memory_space<smem>>, %arg2: memref<1x4x256xf32, #tpu.memory_space<vmem>>, %arg3: memref<1x4x256xf32, #tpu.memory_space<vmem>>) attributes {dimension_semantics = [#tpu.dimension_semantics<parallel>], iteration_bounds = array<i64: 2>, scalar_prefetch = 0 : i64, scratch_operands = 0 : i64, tpu.core_type = #tpu.core_type<tc>, window_params = [{transform_indices = @transform_0, window_bounds = array<i64: 56>}, {transform_indices = @transform_1, window_bounds = array<i64: 1, 4, 256>}, {transform_indices = @transform_2, window_bounds = array<i64: 1, 4, 256>}]} {
    %c0 = arith.constant 0 : index
    %c0_0 = arith.constant 0 : index
    %c0_1 = arith.constant 0 : index
    %0 = vector.load %arg2[%c0, %c0_0, %c0_1] : memref<1x4x256xf32, #tpu.memory_space<vmem>>, vector<1x1x256xf32>
    %1 = vector.shape_cast %0 : vector<1x1x256xf32> to vector<1x256xf32>
    %c0_2 = arith.constant 0 : index
    %c1 = arith.constant 1 : index
    %c0_3 = arith.constant 0 : index
    %2 = vector.load %arg2[%c0_2, %c1, %c0_3] : memref<1x4x256xf32, #tpu.memory_space<vmem>>, vector<1x1x256xf32>
    %3 = vector.shape_cast %2 : vector<1x1x256xf32> to vector<1x256xf32>
    %c0_4 = arith.constant 0 : index
    %c2 = arith.constant 2 : index
    %c0_5 = arith.constant 0 : index
    %4 = vector.load %arg2[%c0_4, %c2, %c0_5] : memref<1x4x256xf32, #tpu.memory_space<vmem>>, vector<1x1x256xf32>
    %5 = vector.shape_cast %4 : vector<1x1x256xf32> to vector<1x256xf32>
    %c0_6 = arith.constant 0 : index
    %c3 = arith.constant 3 : index
    %c0_7 = arith.constant 0 : index
    %6 = vector.load %arg2[%c0_6, %c3, %c0_7] : memref<1x4x256xf32, #tpu.memory_space<vmem>>, vector<1x1x256xf32>
    %7 = vector.shape_cast %6 : vector<1x1x256xf32> to vector<1x256xf32>
    %c0_8 = arith.constant 0 : index
    %8 = memref.load %arg1[%c0_8] : memref<56xf32, #tpu.memory_space<smem>>
    %9 = vector.broadcast %8 : f32 to vector<1x256xf32>
    %10 = arith.mulf %1, %9 : vector<1x256xf32>
    %c1_9 = arith.constant 1 : index
    %11 = memref.load %arg1[%c1_9] : memref<56xf32, #tpu.memory_space<smem>>
    %12 = vector.broadcast %11 : f32 to vector<1x256xf32>
    %13 = arith.mulf %3, %12 : vector<1x256xf32>
    %14 = arith.addf %10, %13 : vector<1x256xf32>
    %c2_10 = arith.constant 2 : index
    %15 = memref.load %arg1[%c2_10] : memref<56xf32, #tpu.memory_space<smem>>
    %16 = vector.broadcast %15 : f32 to vector<1x256xf32>
    %17 = arith.mulf %5, %16 : vector<1x256xf32>
    %18 = arith.addf %14, %17 : vector<1x256xf32>
    %c3_11 = arith.constant 3 : index
    %19 = memref.load %arg1[%c3_11] : memref<56xf32, #tpu.memory_space<smem>>
    %20 = vector.broadcast %19 : f32 to vector<1x256xf32>
    %21 = arith.mulf %7, %20 : vector<1x256xf32>
    %22 = arith.addf %18, %21 : vector<1x256xf32>
    %c16 = arith.constant 16 : index
    %23 = memref.load %arg1[%c16] : memref<56xf32, #tpu.memory_space<smem>>
    %24 = vector.broadcast %23 : f32 to vector<1x256xf32>
    %25 = arith.addf %22, %24 : vector<1x256xf32>
    %c4 = arith.constant 4 : index
    %26 = memref.load %arg1[%c4] : memref<56xf32, #tpu.memory_space<smem>>
    %27 = vector.broadcast %26 : f32 to vector<1x256xf32>
    %28 = arith.mulf %1, %27 : vector<1x256xf32>
    %c5 = arith.constant 5 : index
    %29 = memref.load %arg1[%c5] : memref<56xf32, #tpu.memory_space<smem>>
    %30 = vector.broadcast %29 : f32 to vector<1x256xf32>
    %31 = arith.mulf %3, %30 : vector<1x256xf32>
    %32 = arith.addf %28, %31 : vector<1x256xf32>
    %c6 = arith.constant 6 : index
    %33 = memref.load %arg1[%c6] : memref<56xf32, #tpu.memory_space<smem>>
    %34 = vector.broadcast %33 : f32 to vector<1x256xf32>
    %35 = arith.mulf %5, %34 : vector<1x256xf32>
    %36 = arith.addf %32, %35 : vector<1x256xf32>
    %c7 = arith.constant 7 : index
    %37 = memref.load %arg1[%c7] : memref<56xf32, #tpu.memory_space<smem>>
    %38 = vector.broadcast %37 : f32 to vector<1x256xf32>
    %39 = arith.mulf %7, %38 : vector<1x256xf32>
    %40 = arith.addf %36, %39 : vector<1x256xf32>
    %c17 = arith.constant 17 : index
    %41 = memref.load %arg1[%c17] : memref<56xf32, #tpu.memory_space<smem>>
    %42 = vector.broadcast %41 : f32 to vector<1x256xf32>
    %43 = arith.addf %40, %42 : vector<1x256xf32>
    %c8 = arith.constant 8 : index
    %44 = memref.load %arg1[%c8] : memref<56xf32, #tpu.memory_space<smem>>
    %45 = vector.broadcast %44 : f32 to vector<1x256xf32>
    %46 = arith.mulf %1, %45 : vector<1x256xf32>
    %c9 = arith.constant 9 : index
    %47 = memref.load %arg1[%c9] : memref<56xf32, #tpu.memory_space<smem>>
    %48 = vector.broadcast %47 : f32 to vector<1x256xf32>
    %49 = arith.mulf %3, %48 : vector<1x256xf32>
    %50 = arith.addf %46, %49 : vector<1x256xf32>
    %c10 = arith.constant 10 : index
    %51 = memref.load %arg1[%c10] : memref<56xf32, #tpu.memory_space<smem>>
    %52 = vector.broadcast %51 : f32 to vector<1x256xf32>
    %53 = arith.mulf %5, %52 : vector<1x256xf32>
    %54 = arith.addf %50, %53 : vector<1x256xf32>
    %c11 = arith.constant 11 : index
    %55 = memref.load %arg1[%c11] : memref<56xf32, #tpu.memory_space<smem>>
    %56 = vector.broadcast %55 : f32 to vector<1x256xf32>
    %57 = arith.mulf %7, %56 : vector<1x256xf32>
    %58 = arith.addf %54, %57 : vector<1x256xf32>
    %c18 = arith.constant 18 : index
    %59 = memref.load %arg1[%c18] : memref<56xf32, #tpu.memory_space<smem>>
    %60 = vector.broadcast %59 : f32 to vector<1x256xf32>
    %61 = arith.addf %58, %60 : vector<1x256xf32>
    %c12 = arith.constant 12 : index
    %62 = memref.load %arg1[%c12] : memref<56xf32, #tpu.memory_space<smem>>
    %63 = vector.broadcast %62 : f32 to vector<1x256xf32>
    %64 = arith.mulf %1, %63 : vector<1x256xf32>
    %c13 = arith.constant 13 : index
    %65 = memref.load %arg1[%c13] : memref<56xf32, #tpu.memory_space<smem>>
    %66 = vector.broadcast %65 : f32 to vector<1x256xf32>
    %67 = arith.mulf %3, %66 : vector<1x256xf32>
    %68 = arith.addf %64, %67 : vector<1x256xf32>
    %c14 = arith.constant 14 : index
    %69 = memref.load %arg1[%c14] : memref<56xf32, #tpu.memory_space<smem>>
    %70 = vector.broadcast %69 : f32 to vector<1x256xf32>
    %71 = arith.mulf %5, %70 : vector<1x256xf32>
    %72 = arith.addf %68, %71 : vector<1x256xf32>
    %c15 = arith.constant 15 : index
    %73 = memref.load %arg1[%c15] : memref<56xf32, #tpu.memory_space<smem>>
    %74 = vector.broadcast %73 : f32 to vector<1x256xf32>
    %75 = arith.mulf %7, %74 : vector<1x256xf32>
    %76 = arith.addf %72, %75 : vector<1x256xf32>
    %c19 = arith.constant 19 : index
    %77 = memref.load %arg1[%c19] : memref<56xf32, #tpu.memory_space<smem>>
    %78 = vector.broadcast %77 : f32 to vector<1x256xf32>
    %79 = arith.addf %76, %78 : vector<1x256xf32>
    %80 = arith.addf %25, %43 : vector<1x256xf32>
    %81 = arith.addf %80, %61 : vector<1x256xf32>
    %82 = arith.addf %81, %79 : vector<1x256xf32>
    %cst = arith.constant dense<0.000000e+00> : vector<1xf32>
    %83 = vector.multi_reduction <add>, %82, %cst [1] : vector<1x256xf32> to vector<1xf32>
    %84 = vector.shape_cast %83 : vector<1xf32> to vector<1x1xf32>
    %cst_12 = arith.constant 9.765625E-4 : f32
    %85 = vector.broadcast %cst_12 : f32 to vector<1x1xf32>
    %86 = arith.mulf %84, %85 : vector<1x1xf32>
    %87 = vector.broadcast %86 : vector<1x1xf32> to vector<1x256xf32>
    %88 = arith.subf %25, %87 : vector<1x256xf32>
    %89 = vector.broadcast %86 : vector<1x1xf32> to vector<1x256xf32>
    %90 = arith.subf %43, %89 : vector<1x256xf32>
    %91 = vector.broadcast %86 : vector<1x1xf32> to vector<1x256xf32>
    %92 = arith.subf %61, %91 : vector<1x256xf32>
    %93 = vector.broadcast %86 : vector<1x1xf32> to vector<1x256xf32>
    %94 = arith.subf %79, %93 : vector<1x256xf32>
    %95 = arith.mulf %88, %88 : vector<1x256xf32>
    %96 = arith.mulf %90, %90 : vector<1x256xf32>
    %97 = arith.addf %95, %96 : vector<1x256xf32>
    %98 = arith.mulf %92, %92 : vector<1x256xf32>
    %99 = arith.addf %97, %98 : vector<1x256xf32>
    %100 = arith.mulf %94, %94 : vector<1x256xf32>
    %101 = arith.addf %99, %100 : vector<1x256xf32>
    %cst_13 = arith.constant dense<0.000000e+00> : vector<1xf32>
    %102 = vector.multi_reduction <add>, %101, %cst_13 [1] : vector<1x256xf32> to vector<1xf32>
    %103 = vector.shape_cast %102 : vector<1xf32> to vector<1x1xf32>
    %cst_14 = arith.constant 9.765625E-4 : f32
    %104 = vector.broadcast %cst_14 : f32 to vector<1x1xf32>
    %105 = arith.mulf %103, %104 : vector<1x1xf32>
    %cst_15 = arith.constant 9.99999974E-6 : f32
    %106 = vector.broadcast %cst_15 : f32 to vector<1x1xf32>
    %107 = arith.addf %105, %106 : vector<1x1xf32>
    %108 = math.rsqrt %107 : vector<1x1xf32>
    %109 = vector.broadcast %108 : vector<1x1xf32> to vector<1x256xf32>
    %110 = arith.mulf %88, %109 : vector<1x256xf32>
    %c20 = arith.constant 20 : index
    %111 = memref.load %arg1[%c20] : memref<56xf32, #tpu.memory_space<smem>>
    %112 = vector.broadcast %111 : f32 to vector<1x256xf32>
    %113 = arith.mulf %110, %112 : vector<1x256xf32>
    %c24 = arith.constant 24 : index
    %114 = memref.load %arg1[%c24] : memref<56xf32, #tpu.memory_space<smem>>
    %115 = vector.broadcast %114 : f32 to vector<1x256xf32>
    %116 = arith.addf %113, %115 : vector<1x256xf32>
    %117 = vector.broadcast %108 : vector<1x1xf32> to vector<1x256xf32>
    %118 = arith.mulf %90, %117 : vector<1x256xf32>
    %c21 = arith.constant 21 : index
    %119 = memref.load %arg1[%c21] : memref<56xf32, #tpu.memory_space<smem>>
    %120 = vector.broadcast %119 : f32 to vector<1x256xf32>
    %121 = arith.mulf %118, %120 : vector<1x256xf32>
    %c25 = arith.constant 25 : index
    %122 = memref.load %arg1[%c25] : memref<56xf32, #tpu.memory_space<smem>>
    %123 = vector.broadcast %122 : f32 to vector<1x256xf32>
    %124 = arith.addf %121, %123 : vector<1x256xf32>
    %125 = vector.broadcast %108 : vector<1x1xf32> to vector<1x256xf32>
    %126 = arith.mulf %92, %125 : vector<1x256xf32>
    %c22 = arith.constant 22 : index
    %127 = memref.load %arg1[%c22] : memref<56xf32, #tpu.memory_space<smem>>
    %128 = vector.broadcast %127 : f32 to vector<1x256xf32>
    %129 = arith.mulf %126, %128 : vector<1x256xf32>
    %c26 = arith.constant 26 : index
    %130 = memref.load %arg1[%c26] : memref<56xf32, #tpu.memory_space<smem>>
    %131 = vector.broadcast %130 : f32 to vector<1x256xf32>
    %132 = arith.addf %129, %131 : vector<1x256xf32>
    %133 = vector.broadcast %108 : vector<1x1xf32> to vector<1x256xf32>
    %134 = arith.mulf %94, %133 : vector<1x256xf32>
    %c23 = arith.constant 23 : index
    %135 = memref.load %arg1[%c23] : memref<56xf32, #tpu.memory_space<smem>>
    %136 = vector.broadcast %135 : f32 to vector<1x256xf32>
    %137 = arith.mulf %134, %136 : vector<1x256xf32>
    %c27 = arith.constant 27 : index
    %138 = memref.load %arg1[%c27] : memref<56xf32, #tpu.memory_space<smem>>
    %139 = vector.broadcast %138 : f32 to vector<1x256xf32>
    %140 = arith.addf %137, %139 : vector<1x256xf32>
    %cst_16 = arith.constant 0.000000e+00 : f32
    %141 = vector.broadcast %cst_16 : f32 to vector<1x256xf32>
    %142 = arith.maximumf %116, %141 : vector<1x256xf32>
    %cst_17 = arith.constant 0.000000e+00 : f32
    %143 = vector.broadcast %cst_17 : f32 to vector<1x256xf32>
    %144 = arith.maximumf %124, %143 : vector<1x256xf32>
    %cst_18 = arith.constant 0.000000e+00 : f32
    %145 = vector.broadcast %cst_18 : f32 to vector<1x256xf32>
    %146 = arith.maximumf %132, %145 : vector<1x256xf32>
    %cst_19 = arith.constant 0.000000e+00 : f32
    %147 = vector.broadcast %cst_19 : f32 to vector<1x256xf32>
    %148 = arith.maximumf %140, %147 : vector<1x256xf32>
    %c28 = arith.constant 28 : index
    %149 = memref.load %arg1[%c28] : memref<56xf32, #tpu.memory_space<smem>>
    %150 = vector.broadcast %149 : f32 to vector<1x256xf32>
    %151 = arith.mulf %142, %150 : vector<1x256xf32>
    %c29 = arith.constant 29 : index
    %152 = memref.load %arg1[%c29] : memref<56xf32, #tpu.memory_space<smem>>
    %153 = vector.broadcast %152 : f32 to vector<1x256xf32>
    %154 = arith.mulf %144, %153 : vector<1x256xf32>
    %155 = arith.addf %151, %154 : vector<1x256xf32>
    %c30 = arith.constant 30 : index
    %156 = memref.load %arg1[%c30] : memref<56xf32, #tpu.memory_space<smem>>
    %157 = vector.broadcast %156 : f32 to vector<1x256xf32>
    %158 = arith.mulf %146, %157 : vector<1x256xf32>
    %159 = arith.addf %155, %158 : vector<1x256xf32>
    %c31 = arith.constant 31 : index
    %160 = memref.load %arg1[%c31] : memref<56xf32, #tpu.memory_space<smem>>
    %161 = vector.broadcast %160 : f32 to vector<1x256xf32>
    %162 = arith.mulf %148, %161 : vector<1x256xf32>
    %163 = arith.addf %159, %162 : vector<1x256xf32>
    %c44 = arith.constant 44 : index
    %164 = memref.load %arg1[%c44] : memref<56xf32, #tpu.memory_space<smem>>
    %165 = vector.broadcast %164 : f32 to vector<1x256xf32>
    %166 = arith.addf %163, %165 : vector<1x256xf32>
    %c32 = arith.constant 32 : index
    %167 = memref.load %arg1[%c32] : memref<56xf32, #tpu.memory_space<smem>>
    %168 = vector.broadcast %167 : f32 to vector<1x256xf32>
    %169 = arith.mulf %142, %168 : vector<1x256xf32>
    %c33 = arith.constant 33 : index
    %170 = memref.load %arg1[%c33] : memref<56xf32, #tpu.memory_space<smem>>
    %171 = vector.broadcast %170 : f32 to vector<1x256xf32>
    %172 = arith.mulf %144, %171 : vector<1x256xf32>
    %173 = arith.addf %169, %172 : vector<1x256xf32>
    %c34 = arith.constant 34 : index
    %174 = memref.load %arg1[%c34] : memref<56xf32, #tpu.memory_space<smem>>
    %175 = vector.broadcast %174 : f32 to vector<1x256xf32>
    %176 = arith.mulf %146, %175 : vector<1x256xf32>
    %177 = arith.addf %173, %176 : vector<1x256xf32>
    %c35 = arith.constant 35 : index
    %178 = memref.load %arg1[%c35] : memref<56xf32, #tpu.memory_space<smem>>
    %179 = vector.broadcast %178 : f32 to vector<1x256xf32>
    %180 = arith.mulf %148, %179 : vector<1x256xf32>
    %181 = arith.addf %177, %180 : vector<1x256xf32>
    %c45 = arith.constant 45 : index
    %182 = memref.load %arg1[%c45] : memref<56xf32, #tpu.memory_space<smem>>
    %183 = vector.broadcast %182 : f32 to vector<1x256xf32>
    %184 = arith.addf %181, %183 : vector<1x256xf32>
    %c36 = arith.constant 36 : index
    %185 = memref.load %arg1[%c36] : memref<56xf32, #tpu.memory_space<smem>>
    %186 = vector.broadcast %185 : f32 to vector<1x256xf32>
    %187 = arith.mulf %142, %186 : vector<1x256xf32>
    %c37 = arith.constant 37 : index
    %188 = memref.load %arg1[%c37] : memref<56xf32, #tpu.memory_space<smem>>
    %189 = vector.broadcast %188 : f32 to vector<1x256xf32>
    %190 = arith.mulf %144, %189 : vector<1x256xf32>
    %191 = arith.addf %187, %190 : vector<1x256xf32>
    %c38 = arith.constant 38 : index
    %192 = memref.load %arg1[%c38] : memref<56xf32, #tpu.memory_space<smem>>
    %193 = vector.broadcast %192 : f32 to vector<1x256xf32>
    %194 = arith.mulf %146, %193 : vector<1x256xf32>
    %195 = arith.addf %191, %194 : vector<1x256xf32>
    %c39 = arith.constant 39 : index
    %196 = memref.load %arg1[%c39] : memref<56xf32, #tpu.memory_space<smem>>
    %197 = vector.broadcast %196 : f32 to vector<1x256xf32>
    %198 = arith.mulf %148, %197 : vector<1x256xf32>
    %199 = arith.addf %195, %198 : vector<1x256xf32>
    %c46 = arith.constant 46 : index
    %200 = memref.load %arg1[%c46] : memref<56xf32, #tpu.memory_space<smem>>
    %201 = vector.broadcast %200 : f32 to vector<1x256xf32>
    %202 = arith.addf %199, %201 : vector<1x256xf32>
    %c40 = arith.constant 40 : index
    %203 = memref.load %arg1[%c40] : memref<56xf32, #tpu.memory_space<smem>>
    %204 = vector.broadcast %203 : f32 to vector<1x256xf32>
    %205 = arith.mulf %142, %204 : vector<1x256xf32>
    %c41 = arith.constant 41 : index
    %206 = memref.load %arg1[%c41] : memref<56xf32, #tpu.memory_space<smem>>
    %207 = vector.broadcast %206 : f32 to vector<1x256xf32>
    %208 = arith.mulf %144, %207 : vector<1x256xf32>
    %209 = arith.addf %205, %208 : vector<1x256xf32>
    %c42 = arith.constant 42 : index
    %210 = memref.load %arg1[%c42] : memref<56xf32, #tpu.memory_space<smem>>
    %211 = vector.broadcast %210 : f32 to vector<1x256xf32>
    %212 = arith.mulf %146, %211 : vector<1x256xf32>
    %213 = arith.addf %209, %212 : vector<1x256xf32>
    %c43 = arith.constant 43 : index
    %214 = memref.load %arg1[%c43] : memref<56xf32, #tpu.memory_space<smem>>
    %215 = vector.broadcast %214 : f32 to vector<1x256xf32>
    %216 = arith.mulf %148, %215 : vector<1x256xf32>
    %217 = arith.addf %213, %216 : vector<1x256xf32>
    %c47 = arith.constant 47 : index
    %218 = memref.load %arg1[%c47] : memref<56xf32, #tpu.memory_space<smem>>
    %219 = vector.broadcast %218 : f32 to vector<1x256xf32>
    %220 = arith.addf %217, %219 : vector<1x256xf32>
    %221 = arith.addf %166, %184 : vector<1x256xf32>
    %222 = arith.addf %221, %202 : vector<1x256xf32>
    %223 = arith.addf %222, %220 : vector<1x256xf32>
    %cst_20 = arith.constant dense<0.000000e+00> : vector<1xf32>
    %224 = vector.multi_reduction <add>, %223, %cst_20 [1] : vector<1x256xf32> to vector<1xf32>
    %225 = vector.shape_cast %224 : vector<1xf32> to vector<1x1xf32>
    %cst_21 = arith.constant 9.765625E-4 : f32
    %226 = vector.broadcast %cst_21 : f32 to vector<1x1xf32>
    %227 = arith.mulf %225, %226 : vector<1x1xf32>
    %228 = vector.broadcast %227 : vector<1x1xf32> to vector<1x256xf32>
    %229 = arith.subf %166, %228 : vector<1x256xf32>
    %230 = vector.broadcast %227 : vector<1x1xf32> to vector<1x256xf32>
    %231 = arith.subf %184, %230 : vector<1x256xf32>
    %232 = vector.broadcast %227 : vector<1x1xf32> to vector<1x256xf32>
    %233 = arith.subf %202, %232 : vector<1x256xf32>
    %234 = vector.broadcast %227 : vector<1x1xf32> to vector<1x256xf32>
    %235 = arith.subf %220, %234 : vector<1x256xf32>
    %236 = arith.mulf %229, %229 : vector<1x256xf32>
    %237 = arith.mulf %231, %231 : vector<1x256xf32>
    %238 = arith.addf %236, %237 : vector<1x256xf32>
    %239 = arith.mulf %233, %233 : vector<1x256xf32>
    %240 = arith.addf %238, %239 : vector<1x256xf32>
    %241 = arith.mulf %235, %235 : vector<1x256xf32>
    %242 = arith.addf %240, %241 : vector<1x256xf32>
    %cst_22 = arith.constant dense<0.000000e+00> : vector<1xf32>
    %243 = vector.multi_reduction <add>, %242, %cst_22 [1] : vector<1x256xf32> to vector<1xf32>
    %244 = vector.shape_cast %243 : vector<1xf32> to vector<1x1xf32>
    %cst_23 = arith.constant 9.765625E-4 : f32
    %245 = vector.broadcast %cst_23 : f32 to vector<1x1xf32>
    %246 = arith.mulf %244, %245 : vector<1x1xf32>
    %cst_24 = arith.constant 9.99999974E-6 : f32
    %247 = vector.broadcast %cst_24 : f32 to vector<1x1xf32>
    %248 = arith.addf %246, %247 : vector<1x1xf32>
    %249 = math.rsqrt %248 : vector<1x1xf32>
    %250 = vector.broadcast %249 : vector<1x1xf32> to vector<1x256xf32>
    %251 = arith.mulf %229, %250 : vector<1x256xf32>
    %c48 = arith.constant 48 : index
    %252 = memref.load %arg1[%c48] : memref<56xf32, #tpu.memory_space<smem>>
    %253 = vector.broadcast %252 : f32 to vector<1x256xf32>
    %254 = arith.mulf %251, %253 : vector<1x256xf32>
    %c52 = arith.constant 52 : index
    %255 = memref.load %arg1[%c52] : memref<56xf32, #tpu.memory_space<smem>>
    %256 = vector.broadcast %255 : f32 to vector<1x256xf32>
    %257 = arith.addf %254, %256 : vector<1x256xf32>
    %258 = vector.broadcast %249 : vector<1x1xf32> to vector<1x256xf32>
    %259 = arith.mulf %231, %258 : vector<1x256xf32>
    %c49 = arith.constant 49 : index
    %260 = memref.load %arg1[%c49] : memref<56xf32, #tpu.memory_space<smem>>
    %261 = vector.broadcast %260 : f32 to vector<1x256xf32>
    %262 = arith.mulf %259, %261 : vector<1x256xf32>
    %c53 = arith.constant 53 : index
    %263 = memref.load %arg1[%c53] : memref<56xf32, #tpu.memory_space<smem>>
    %264 = vector.broadcast %263 : f32 to vector<1x256xf32>
    %265 = arith.addf %262, %264 : vector<1x256xf32>
    %266 = vector.broadcast %249 : vector<1x1xf32> to vector<1x256xf32>
    %267 = arith.mulf %233, %266 : vector<1x256xf32>
    %c50 = arith.constant 50 : index
    %268 = memref.load %arg1[%c50] : memref<56xf32, #tpu.memory_space<smem>>
    %269 = vector.broadcast %268 : f32 to vector<1x256xf32>
    %270 = arith.mulf %267, %269 : vector<1x256xf32>
    %c54 = arith.constant 54 : index
    %271 = memref.load %arg1[%c54] : memref<56xf32, #tpu.memory_space<smem>>
    %272 = vector.broadcast %271 : f32 to vector<1x256xf32>
    %273 = arith.addf %270, %272 : vector<1x256xf32>
    %274 = vector.broadcast %249 : vector<1x1xf32> to vector<1x256xf32>
    %275 = arith.mulf %235, %274 : vector<1x256xf32>
    %c51 = arith.constant 51 : index
    %276 = memref.load %arg1[%c51] : memref<56xf32, #tpu.memory_space<smem>>
    %277 = vector.broadcast %276 : f32 to vector<1x256xf32>
    %278 = arith.mulf %275, %277 : vector<1x256xf32>
    %c55 = arith.constant 55 : index
    %279 = memref.load %arg1[%c55] : memref<56xf32, #tpu.memory_space<smem>>
    %280 = vector.broadcast %279 : f32 to vector<1x256xf32>
    %281 = arith.addf %278, %280 : vector<1x256xf32>
    %282 = arith.addf %257, %1 : vector<1x256xf32>
    %cst_25 = arith.constant 0.000000e+00 : f32
    %283 = vector.broadcast %cst_25 : f32 to vector<1x256xf32>
    %284 = arith.maximumf %282, %283 : vector<1x256xf32>
    %c0_26 = arith.constant 0 : index
    %c0_27 = arith.constant 0 : index
    %c0_28 = arith.constant 0 : index
    %285 = vector.load %arg3[%c0_26, %c0_27, %c0_28] : memref<1x4x256xf32, #tpu.memory_space<vmem>>, vector<1x1x256xf32>
    %286 = vector.shape_cast %285 : vector<1x1x256xf32> to vector<1x256xf32>
    %287 = vector.shape_cast %284 : vector<1x256xf32> to vector<1x1x256xf32>
    tpu.vector_store %arg3[%c0_26, %c0_27, %c0_28], %287 {strides = array<i32>} : memref<1x4x256xf32, #tpu.memory_space<vmem>>, vector<1x1x256xf32>,
    %288 = arith.addf %265, %3 : vector<1x256xf32>
    %cst_29 = arith.constant 0.000000e+00 : f32
    %289 = vector.broadcast %cst_29 : f32 to vector<1x256xf32>
    %290 = arith.maximumf %288, %289 : vector<1x256xf32>
    %c0_30 = arith.constant 0 : index
    %c1_31 = arith.constant 1 : index
    %c0_32 = arith.constant 0 : index
    %291 = vector.load %arg3[%c0_30, %c1_31, %c0_32] : memref<1x4x256xf32, #tpu.memory_space<vmem>>, vector<1x1x256xf32>
    %292 = vector.shape_cast %291 : vector<1x1x256xf32> to vector<1x256xf32>
    %293 = vector.shape_cast %290 : vector<1x256xf32> to vector<1x1x256xf32>
    tpu.vector_store %arg3[%c0_30, %c1_31, %c0_32], %293 {strides = array<i32>} : memref<1x4x256xf32, #tpu.memory_space<vmem>>, vector<1x1x256xf32>,
    %294 = arith.addf %273, %5 : vector<1x256xf32>
    %cst_33 = arith.constant 0.000000e+00 : f32
    %295 = vector.broadcast %cst_33 : f32 to vector<1x256xf32>
    %296 = arith.maximumf %294, %295 : vector<1x256xf32>
    %c0_34 = arith.constant 0 : index
    %c2_35 = arith.constant 2 : index
    %c0_36 = arith.constant 0 : index
    %297 = vector.load %arg3[%c0_34, %c2_35, %c0_36] : memref<1x4x256xf32, #tpu.memory_space<vmem>>, vector<1x1x256xf32>
    %298 = vector.shape_cast %297 : vector<1x1x256xf32> to vector<1x256xf32>
    %299 = vector.shape_cast %296 : vector<1x256xf32> to vector<1x1x256xf32>
    tpu.vector_store %arg3[%c0_34, %c2_35, %c0_36], %299 {strides = array<i32>} : memref<1x4x256xf32, #tpu.memory_space<vmem>>, vector<1x1x256xf32>,
    %300 = arith.addf %281, %7 : vector<1x256xf32>
    %cst_37 = arith.constant 0.000000e+00 : f32
    %301 = vector.broadcast %cst_37 : f32 to vector<1x256xf32>
    %302 = arith.maximumf %300, %301 : vector<1x256xf32>
    %c0_38 = arith.constant 0 : index
    %c3_39 = arith.constant 3 : index
    %c0_40 = arith.constant 0 : index
    %303 = vector.load %arg3[%c0_38, %c3_39, %c0_40] : memref<1x4x256xf32, #tpu.memory_space<vmem>>, vector<1x1x256xf32>
    %304 = vector.shape_cast %303 : vector<1x1x256xf32> to vector<1x256xf32>
    %305 = vector.shape_cast %302 : vector<1x256xf32> to vector<1x1x256xf32>
    tpu.vector_store %arg3[%c0_38, %c3_39, %c0_40], %305 {strides = array<i32>} : memref<1x4x256xf32, #tpu.memory_space<vmem>>, vector<1x1x256xf32>,
    return
  }
  func.func @transform_0(%arg0: i32) -> i32 {
    %c0_i32 = arith.constant 0 : i32
    %c0_i32_0 = arith.constant 0 : i32
    return %c0_i32 : i32
  }
  func.func @transform_1(%arg0: i32) -> (i32, i32, i32) {
    %c0_i32 = arith.constant 0 : i32
    %c0_i32_0 = arith.constant 0 : i32
    %c0_i32_1 = arith.constant 0 : i32
    return %arg0, %c0_i32, %c0_i32_0 : i32, i32, i32
  }
  func.func @transform_2(%arg0: i32) -> (i32, i32, i32) {
    %c0_i32 = arith.constant 0 : i32
    %c0_i32_0 = arith.constant 0 : i32
    %c0_i32_1 = arith.constant 0 : i32
    return %arg0, %c0_i32, %c0_i32_0 : i32, i32, i32
  }
}

</mosaic_0001>

<llo_original>
// kernel: tpu_custom_call.1
$region0: #{tpu_custom_call.1}
  #allocation0 [shape = 'u32[]', space=smem, size = 0x4, offset = 0x4, fixed_abs, tag = 'smem constant byte address 0x4 - core index']
  #allocation1 [shape = 'u32[72,128]{1,0:T(1,128)}', space=vmem, size = 0x9000, scoped, tag = 'internal scratch']
  %s0 = inlined_call_operand.hbm [shape: f32[56], index: 0, kind: input, shape index: {}]
  %s1 = inlined_call_operand.hbm [shape: f32[2,4,256], index: 1, kind: input, shape index: {}]
  %s2 = inlined_call_operand.hbm [shape: f32[2,4,256], index: 2, kind: output, shape index: {}]
  %s3 = sld [smem:[#allocation0]]
  $region49: #{tpu_custom_call.1} parent=0
    _
  %s5 = ssub.s32 1, %s3
  %s6 = scalar_select 0, %s5, %s3
  $region1: #{tpu_custom_call.1} parent=0
    #allocation2 [shape = 'u8[512]{0}', space=smem, size = 0x200, scoped, tag = 'input window, operand 0, single buffered']
    #allocation3 [shape = 's32[2]{0}', space=sflag, size = 0x8, scoped, tag = 'scoped memory for tpu_custom_call.1']
    #allocation4 [shape = 's32[2]{0}', space=sflag, size = 0x8, scoped, tag = 'scoped memory for tpu_custom_call.1']
    #allocation5 [shape = 's32[2]{0}', space=sflag, size = 0x8, scoped, tag = 'scoped memory for tpu_custom_call.1']
    #allocation6 [shape = 'u8[8192]{0}', space=vmem, size = 0x2000, scoped, tag = 'input window, operand 1']
    #allocation7 [shape = 'u8[8192]{0}', space=vmem, size = 0x2000, scoped, tag = 'output window, operand 0']
    %7 = vsyncpa [#allocation5], 0
    %8 = vsyncpa [#allocation3], 0
    %s9 = scalar_lea.sflag [#allocation3], 1
    %10 = vsyncpa %s9, 0
    %11 = vsyncpa [#allocation4], 0
    %s12 = scalar_lea.sflag [#allocation4], 1
    %13 = vsyncpa %s12, 0
    loop: start=0, step=1, limit=4
    $region2: #{tpu_custom_call.1} parent=1 // loop_pre_header
      _
    $region3: #{tpu_custom_call.1} parent=1 // loop_header
      %s15 = sphi 0, %s19
      %p16 = scmp.ge.s32.totalorder %s15, 4
      %s23 = sphi 0, %s23
      %s25 = sphi 0, %s23
      %s26 = sphi 0, %s25
      %s40 = sphi 0, %s26
      %s46 = sphi 0, %s48
      %s49 = sphi 0, %s46
      %s50 = sphi 0, %s49
      %s66 = sphi 0, %s50
      %s72 = sphi 0, %s74
      %s75 = sphi 0, %s72
      %s76 = sphi 0, %s75
      %s92 = sphi 0, %s76
    $region4: #{tpu_custom_call.1} parent=1 // loop_header_branch
      %18 = sbr.rel (%p16) target = $region8
    $region5: #{tpu_custom_call.1} parent=1 // loop_body
      %s20 = ssub.s32 %s15, 1
      %s21 = ssub.s32 %s15, 2
      %s22 = sadd.s32 %s15, 1
      %s24 = sadd.s32 %s23, 1
      %p27 = scmp.eq.s32.totalorder %s15, 1
      %p28 = scmp.ne.s32.totalorder %s23, %s25
      %p29 = scmp.eq.s32.totalorder %s15, 0
      %p30 = por %p28, %p29
      %p31 = scmp.ne.s32.totalorder %s23, %s25
      %p32 = scmp.eq.s32.totalorder %s20, 1
      %p33 = por %p31, %p32
      %p34 = scmp.ne.s32.totalorder %s25, %s26
      %p35 = scmp.eq.s32.totalorder %s20, 0
      %p36 = por %p34, %p35
      %p37 = scmp.ne.s32.totalorder %s25, %s26
      %p38 = scmp.eq.s32.totalorder %s21, 1
      %p39 = por %p37, %p38
      %p41 = scmp.ne.s32.totalorder %s26, %s40
      %p42 = scmp.eq.s32.totalorder %s21, 0
      %p43 = por %p41, %p42
      %s44 = ssub.s32 %s15, %s22
      %p45 = scmp.eq.s32.totalorder %s44, 0
      %s47 = sadd.s32 %s46, 1
      %s48 = scalar_select %p45, %s46, %s47
      %p51 = pneg %p45
      %p52 = scmp.eq.s32.totalorder %s15, 1
      %p53 = por %p51, %p52
      %p54 = scmp.ne.s32.totalorder %s46, %s49
      %p55 = scmp.eq.s32.totalorder %s15, 0
      %p56 = por %p54, %p55
      %p57 = scmp.ne.s32.totalorder %s46, %s49
      %p58 = scmp.eq.s32.totalorder %s20, 1
      %p59 = por %p57, %p58
      %p60 = scmp.ne.s32.totalorder %s49, %s50
      %p61 = scmp.eq.s32.totalorder %s20, 0
      %p62 = por %p60, %p61
      %p63 = scmp.ne.s32.totalorder %s49, %s50
      %p64 = scmp.eq.s32.totalorder %s21, 1
      %p65 = por %p63, %p64
      %p67 = scmp.ne.s32.totalorder %s50, %s66
      %p68 = scmp.eq.s32.totalorder %s21, 0
      %p69 = por %p67, %p68
      %s70 = ssub.s32 %s15, %s22
      %p71 = scmp.eq.s32.totalorder %s70, 0
      %s73 = sadd.s32 %s72, 1
      %s74 = scalar_select %p71, %s72, %s73
      %p77 = pneg %p71
      %p78 = scmp.eq.s32.totalorder %s15, 1
      %p79 = por %p77, %p78
      %p80 = scmp.ne.s32.totalorder %s72, %s75
      %p81 = scmp.eq.s32.totalorder %s15, 0
      %p82 = por %p80, %p81
      %p83 = scmp.ne.s32.totalorder %s72, %s75
      %p84 = scmp.eq.s32.totalorder %s20, 1
      %p85 = por %p83, %p84
      %p86 = scmp.ne.s32.totalorder %s75, %s76
      %p87 = scmp.eq.s32.totalorder %s20, 0
      %p88 = por %p86, %p87
      %p89 = scmp.ne.s32.totalorder %s75, %s76
      %p90 = scmp.eq.s32.totalorder %s21, 1
      %p91 = por %p89, %p90
      %p93 = scmp.ne.s32.totalorder %s76, %s92
      %p94 = scmp.eq.s32.totalorder %s21, 0
      %p95 = por %p93, %p94
      %p96 = scmp.le.s32.totalorder 1, %s15
      %p97 = scmp.lt.s32.totalorder %s15, 3
      %p98 = pnand %p96, %p97
      %p99 = pneg %p98
      // Predicated region
      $region9: #{tpu_custom_call.1} parent=5 // pred_check
        _
      $region10: #{tpu_custom_call.1} parent=5 // pred_check_branch
        %101 = sbr.rel (%p98) target = $region12
      $region11: #{tpu_custom_call.1} parent=5 // pred_region
        %s102 = ssub.s32 %s15, 1
        // Predicated region
        $region13: #{tpu_custom_call.1} parent=11 // pred_check
          %p103 = pneg %p36
        $region14: #{tpu_custom_call.1} parent=11 // pred_check_branch
          %105 = sbr.rel (%p103) target = $region16
        $region15: #{tpu_custom_call.1} parent=11 // pred_region
          %107 = vsyncadd [#allocation5], 0
          %s109 = sshll.u32 %s0, 4
          %s110 = int_to_ptr.hbm [resolvable:$true] %s109
          %112 = dma.hbm_to_smem %s110, 16, [#allocation2], [#allocation5]
        $region16: #{tpu_custom_call.1} parent=11 // pred_fallthru
          _
      $region12: #{tpu_custom_call.1} parent=5 // pred_fallthru
        _
      %p113 = scmp.lt.s32.totalorder %s15, 2
      // Predicated region
      $region17: #{tpu_custom_call.1} parent=5 // pred_check
        %p114 = pneg %p113
      $region18: #{tpu_custom_call.1} parent=5 // pred_check_branch
        %116 = sbr.rel (%p114) target = $region20
      $region19: #{tpu_custom_call.1} parent=5 // pred_region
        // Predicated region
        $region21: #{tpu_custom_call.1} parent=19 // pred_check
          %p117 = pneg %p56
        $region22: #{tpu_custom_call.1} parent=19 // pred_check_branch
          %119 = sbr.rel (%p117) target = $region24
        $region23: #{tpu_custom_call.1} parent=19 // pred_region
          %s120 = sand.u32 %s46, 1
          %s121 = scalar_lea.sflag [#allocation3], %s120
          %s122 = sand.u32 %s46, 1
          %s123 = smul.addr %s122, 8
          %s124 = scalar_lea.vmem [#allocation6], %s123
          %126 = vsyncadd %s121, 0
          %s127 = smul.addr %s15, 2
          %s128 = smul.addr %s127, 4
          %s129 = scalar_lea.hbm %s1, %s128
          %s131 = sshll.u32 %s129, 4
          %s132 = int_to_ptr.hbm [resolvable:$true] %s131
          %s133 = sshll.u32 %s124, 4
          %s134 = int_to_ptr.vmem [resolvable:$true] %s133
          %136 = dma.hbm_to_vmem [thread:$0]  %s132, 128, %s134, %s121
        $region24: #{tpu_custom_call.1} parent=19 // pred_fallthru
          _
      $region20: #{tpu_custom_call.1} parent=5 // pred_fallthru
        _
      %p137 = scmp.le.s32.totalorder 1, %s15
      %p138 = scmp.lt.s32.totalorder %s15, 3
      %p139 = pnand %p137, %p138
      %p140 = pneg %p139
      // Predicated region
      $region25: #{tpu_custom_call.1} parent=5 // pred_check
        _
      $region26: #{tpu_custom_call.1} parent=5 // pred_check_branch
        %142 = sbr.rel (%p139) target = $region28
      $region27: #{tpu_custom_call.1} parent=5 // pred_region
        %s143 = ssub.s32 %s15, 1
        // Predicated region
        $region29: #{tpu_custom_call.1} parent=27 // pred_check
          %p144 = pneg %p36
        $region30: #{tpu_custom_call.1} parent=27 // pred_check_branch
          %146 = sbr.rel (%p144) target = $region32
        $region31: #{tpu_custom_call.1} parent=27 // pred_region
          %148 = dma.done [#allocation5], 16
        $region32: #{tpu_custom_call.1} parent=27 // pred_fallthru
          _
        %s149 = sand.u32 %s49, 1
        %s150 = scalar_lea.sflag [#allocation3], %s149
        %s151 = sand.u32 %s49, 1
        %s152 = smul.addr %s151, 8
        %s153 = scalar_lea.vmem [#allocation6], %s152
        // Predicated region
        $region33: #{tpu_custom_call.1} parent=27 // pred_check
          %p154 = pneg %p62
        $region34: #{tpu_custom_call.1} parent=27 // pred_check_branch
          %156 = sbr.rel (%p154) target = $region36
        $region35: #{tpu_custom_call.1} parent=27 // pred_region
          %158 = dma.done %s150, 128
        $region36: #{tpu_custom_call.1} parent=27 // pred_fallthru
          _
        %159 = sfence
        %p160 = pneg %p36
        %p161 = pneg %p33
        %s162 = sand.u32 %s49, 1
        %s163 = scalar_lea.sflag [#allocation3], %s162
        %s164 = sand.u32 %s49, 1
        %s165 = smul.addr %s164, 8
        %s166 = scalar_lea.vmem [#allocation6], %s165
        %p167 = pneg %p62
        %p168 = pneg %p59
        %p169 = pneg %p88
        %p170 = pneg %p85
        %s171 = sand.u32 %s75, 1
        %s172 = scalar_lea.sflag [#allocation4], %s171
        %s173 = sand.u32 %s75, 1
        %s174 = smul.addr %s173, 8
        %s175 = scalar_lea.vmem [#allocation7], %s174
        %v176 = vld [vmem:[%s153] ss:$4 sm:$0x3]
        %s177 = scalar_lea.vmem %s153, 1 [#allocation6]
        %v178 = vld [vmem:[%s177] ss:$4 sm:$0x3]
        %s179 = scalar_lea.vmem %s153, 2 [#allocation6]
        %v180 = vld [vmem:[%s179] ss:$4 sm:$0x3]
        %s181 = scalar_lea.vmem %s153, 3 [#allocation6]
        %v182 = vld [vmem:[%s181] ss:$4 sm:$0x3]
        %s183 = sld [smem:[#allocation2]]
        %v184 = vstv %s183
        %v185 = vmul.f32 %v176, %v184
        %s186 = sld [smem:[#allocation2 + $0x1]]
        %v187 = vstv %s186
        %v188 = vmul.f32 %v178, %v187
        %v189 = vadd.f32 %v185, %v188
        %s190 = sld [smem:[#allocation2 + $0x2]]
        %v191 = vstv %s190
        %v192 = vmul.f32 %v180, %v191
        %v193 = vadd.f32 %v189, %v192
        %s194 = sld [smem:[#allocation2 + $0x3]]
        %v195 = vstv %s194
        %v196 = vmul.f32 %v182, %v195
        %v197 = vadd.f32 %v193, %v196
        %s198 = sld [smem:[#allocation2 + $0x10]]
        %v199 = vstv %s198
        %v200 = vadd.f32 %v197, %v199
        %s201 = sld [smem:[#allocation2 + $0x4]]
        %v202 = vstv %s201
        %v203 = vmul.f32 %v176, %v202
        %s204 = sld [smem:[#allocation2 + $0x5]]
        %v205 = vstv %s204
        %v206 = vmul.f32 %v178, %v205
        %v207 = vadd.f32 %v203, %v206
        %s208 = sld [smem:[#allocation2 + $0x6]]
        %v209 = vstv %s208
        %v210 = vmul.f32 %v180, %v209
        %v211 = vadd.f32 %v207, %v210
        %s212 = sld [smem:[#allocation2 + $0x7]]
        %v213 = vstv %s212
        %v214 = vmul.f32 %v182, %v213
        %v215 = vadd.f32 %v211, %v214
        %s216 = sld [smem:[#allocation2 + $0x11]]
        %v217 = vstv %s216
        %v218 = vadd.f32 %v215, %v217
        %s219 = sld [smem:[#allocation2 + $0x8]]
        %v220 = vstv %s219
        %v221 = vmul.f32 %v176, %v220
        %s222 = sld [smem:[#allocation2 + $0x9]]
        %v223 = vstv %s222
        %v224 = vmul.f32 %v178, %v223
        %v225 = vadd.f32 %v221, %v224
        %s226 = sld [smem:[#allocation2 + $0xa]]
        %v227 = vstv %s226
        %v228 = vmul.f32 %v180, %v227
        %v229 = vadd.f32 %v225, %v228
        %s230 = sld [smem:[#allocation2 + $0xb]]
        %v231 = vstv %s230
        %v232 = vmul.f32 %v182, %v231
        %v233 = vadd.f32 %v229, %v232
        %s234 = sld [smem:[#allocation2 + $0x12]]
        %v235 = vstv %s234
        %v236 = vadd.f32 %v233, %v235
        %s237 = sld [smem:[#allocation2 + $0xc]]
        %v238 = vstv %s237
        %v239 = vmul.f32 %v176, %v238
        %s240 = sld [smem:[#allocation2 + $0xd]]
        %v241 = vstv %s240
        %v242 = vmul.f32 %v178, %v241
        %v243 = vadd.f32 %v239, %v242
        %s244 = sld [smem:[#allocation2 + $0xe]]
        %v245 = vstv %s244
        %v246 = vmul.f32 %v180, %v245
        %v247 = vadd.f32 %v243, %v246
        %s248 = sld [smem:[#allocation2 + $0xf]]
        %v249 = vstv %s248
        %v250 = vmul.f32 %v182, %v249
        %v251 = vadd.f32 %v247, %v250
        %s252 = sld [smem:[#allocation2 + $0x13]]
        %v253 = vstv %s252
        %v254 = vadd.f32 %v251, %v253
        %v255 = vadd.f32 %v200, %v218
        %v256 = vadd.f32 %v255, %v236
        %v257 = vadd.f32 %v256, %v254
        %v259 = vperm.slane %v257, 0
        %v260 = vperm.slane %v257, 1
        %vm263 = vcmask 1040384
        %v264 = vsel %vm263, %v259, 0.0
        %v265 = vsel %vm263, %v260, 0.0
        %v266 = vadd.f32 %v264, %v265
        %267 = vadd.xlane.f32.xlu0 %v266
        %v268 = vpop.xlane.xlu0 %267
        %v269 = vmul.f32 %v268, 0.0009765625
        %v271 = vperm.slane %v269, 0
        %v273 = vsub.f32 %v200, %v271
        %v274 = vsub.f32 %v218, %v271
        %v275 = vsub.f32 %v236, %v271
        %v276 = vsub.f32 %v254, %v271
        %v277 = vmul.f32 %v273, %v273
        %v278 = vmul.f32 %v274, %v274
        %v279 = vadd.f32 %v277, %v278
        %v280 = vmul.f32 %v275, %v275
        %v281 = vadd.f32 %v279, %v280
        %v282 = vmul.f32 %v276, %v276
        %v283 = vadd.f32 %v281, %v282
        %v285 = vperm.slane %v283, 0
        %v286 = vperm.slane %v283, 1
        %v289 = vsel %vm263, %v285, 0.0
        %v290 = vsel %vm263, %v286, 0.0
        %v291 = vadd.f32 %v289, %v290
        %292 = vadd.xlane.f32.xlu0 %v291
        %v293 = vpop.xlane.xlu0 %292
        %v294 = vmul.f32 %v293, 0.0009765625
        %v295 = vadd.f32 %v294, 1e-05
        %v296 = vrsqrt.pop %v295
        %v297 = vmul.f32 %v296, %v295
        %v298 = vmul.f32 %v297, %v296
        %v299 = vmul.f32 0.5, %v298
        %v300 = vsub.f32 1.5, %v299
        %v301 = vmul.f32 %v296, %v300
        %vm302 = vweird.f32 %v295
        %vm303 = vweird.f32 %v296
        %vm304 = vmor %vm302, %vm303
        %v305 = vsel %vm304, %v296, %v301
        %v307 = vperm.slane %v305, 0
        %v309 = vmul.f32 %v273, %v307
        %s310 = sld [smem:[#allocation2 + $0x14]]
        %v311 = vstv %s310
        %v312 = vmul.f32 %v309, %v311
        %s313 = sld [smem:[#allocation2 + $0x18]]
        %v314 = vstv %s313
        %v315 = vadd.f32 %v312, %v314
        %v316 = vmul.f32 %v274, %v307
        %s317 = sld [smem:[#allocation2 + $0x15]]
        %v318 = vstv %s317
        %v319 = vmul.f32 %v316, %v318
        %s320 = sld [smem:[#allocation2 + $0x19]]
        %v321 = vstv %s320
        %v322 = vadd.f32 %v319, %v321
        %v323 = vmul.f32 %v275, %v307
        %s324 = sld [smem:[#allocation2 + $0x16]]
        %v325 = vstv %s324
        %v326 = vmul.f32 %v323, %v325
        %s327 = sld [smem:[#allocation2 + $0x1a]]
        %v328 = vstv %s327
        %v329 = vadd.f32 %v326, %v328
        %v330 = vmul.f32 %v276, %v307
        %s331 = sld [smem:[#allocation2 + $0x17]]
        %v332 = vstv %s331
        %v333 = vmul.f32 %v330, %v332
        %s334 = sld [smem:[#allocation2 + $0x1b]]
        %v335 = vstv %s334
        %v336 = vadd.f32 %v333, %v335
        %v337 = vmax.f32 %v315, 0.0
        %v338 = vmax.f32 %v322, 0.0
        %v339 = vmax.f32 %v329, 0.0
        %v340 = vmax.f32 %v336, 0.0
        %s341 = sld [smem:[#allocation2 + $0x1c]]
        %v342 = vstv %s341
        %v343 = vmul.f32 %v337, %v342
        %s344 = sld [smem:[#allocation2 + $0x1d]]
        %v345 = vstv %s344
        %v346 = vmul.f32 %v338, %v345
        %v347 = vadd.f32 %v343, %v346
        %s348 = sld [smem:[#allocation2 + $0x1e]]
        %v349 = vstv %s348
        %v350 = vmul.f32 %v339, %v349
        %v351 = vadd.f32 %v347, %v350
        %s352 = sld [smem:[#allocation2 + $0x1f]]
        %v353 = vstv %s352
        %v354 = vmul.f32 %v340, %v353
        %v355 = vadd.f32 %v351, %v354
        %s356 = sld [smem:[#allocation2 + $0x2c]]
        %v357 = vstv %s356
        %v358 = vadd.f32 %v355, %v357
        %s359 = sld [smem:[#allocation2 + $0x20]]
        %v360 = vstv %s359
        %v361 = vmul.f32 %v337, %v360
        %s362 = sld [smem:[#allocation2 + $0x21]]
        %v363 = vstv %s362
        %v364 = vmul.f32 %v338, %v363
        %v365 = vadd.f32 %v361, %v364
        %s366 = sld [smem:[#allocation2 + $0x22]]
        %v367 = vstv %s366
        %v368 = vmul.f32 %v339, %v367
        %v369 = vadd.f32 %v365, %v368
        %s370 = sld [smem:[#allocation2 + $0x23]]
        %v371 = vstv %s370
        %v372 = vmul.f32 %v340, %v371
        %v373 = vadd.f32 %v369, %v372
        %s374 = sld [smem:[#allocation2 + $0x2d]]
        %v375 = vstv %s374
        %v376 = vadd.f32 %v373, %v375
        %s377 = sld [smem:[#allocation2 + $0x24]]
        %v378 = vstv %s377
        %v379 = vmul.f32 %v337, %v378
        %s380 = sld [smem:[#allocation2 + $0x25]]
        %v381 = vstv %s380
        %v382 = vmul.f32 %v338, %v381
        %v383 = vadd.f32 %v379, %v382
        %s384 = sld [smem:[#allocation2 + $0x26]]
        %v385 = vstv %s384
        %v386 = vmul.f32 %v339, %v385
        %v387 = vadd.f32 %v383, %v386
        %s388 = sld [smem:[#allocation2 + $0x27]]
        %v389 = vstv %s388
        %v390 = vmul.f32 %v340, %v389
        %v391 = vadd.f32 %v387, %v390
        %s392 = sld [smem:[#allocation2 + $0x2e]]
        %v393 = vstv %s392
        %v394 = vadd.f32 %v391, %v393
        %s395 = sld [smem:[#allocation2 + $0x28]]
        %v396 = vstv %s395
        %v397 = vmul.f32 %v337, %v396
        %s398 = sld [smem:[#allocation2 + $0x29]]
        %v399 = vstv %s398
        %v400 = vmul.f32 %v338, %v399
        %v401 = vadd.f32 %v397, %v400
        %s402 = sld [smem:[#allocation2 + $0x2a]]
        %v403 = vstv %s402
        %v404 = vmul.f32 %v339, %v403
        %v405 = vadd.f32 %v401, %v404
        %s406 = sld [smem:[#allocation2 + $0x2b]]
        %v407 = vstv %s406
        %v408 = vmul.f32 %v340, %v407
        %v409 = vadd.f32 %v405, %v408
        %s410 = sld [smem:[#allocation2 + $0x2f]]
        %v411 = vstv %s410
        %v412 = vadd.f32 %v409, %v411
        %v413 = vadd.f32 %v358, %v376
        %v414 = vadd.f32 %v413, %v394
        %v415 = vadd.f32 %v414, %v412
        %v417 = vperm.slane %v415, 0
        %v418 = vperm.slane %v415, 1
        %v421 = vsel %vm263, %v417, 0.0
        %v422 = vsel %vm263, %v418, 0.0
        %v423 = vadd.f32 %v421, %v422
        %424 = vadd.xlane.f32.xlu0 %v423
        %v425 = vpop.xlane.xlu0 %424
        %v426 = vmul.f32 %v425, 0.0009765625
        %v428 = vperm.slane %v426, 0
        %v430 = vsub.f32 %v358, %v428
        %v431 = vsub.f32 %v376, %v428
        %v432 = vsub.f32 %v394, %v428
        %v433 = vsub.f32 %v412, %v428
        %v434 = vmul.f32 %v430, %v430
        %v435 = vmul.f32 %v431, %v431
        %v436 = vadd.f32 %v434, %v435
        %v437 = vmul.f32 %v432, %v432
        %v438 = vadd.f32 %v436, %v437
        %v439 = vmul.f32 %v433, %v433
        %v440 = vadd.f32 %v438, %v439
        %v442 = vperm.slane %v440, 0
        %v443 = vperm.slane %v440, 1
        %v446 = vsel %vm263, %v442, 0.0
        %v447 = vsel %vm263, %v443, 0.0
        %v448 = vadd.f32 %v446, %v447
        %449 = vadd.xlane.f32.xlu0 %v448
        %v450 = vpop.xlane.xlu0 %449
        %v451 = vmul.f32 %v450, 0.0009765625
        %v452 = vadd.f32 %v451, 1e-05
        %v453 = vrsqrt.pop %v452
        %v454 = vmul.f32 %v453, %v452
        %v455 = vmul.f32 %v454, %v453
        %v456 = vmul.f32 0.5, %v455
        %v457 = vsub.f32 1.5, %v456
        %v458 = vmul.f32 %v453, %v457
        %vm459 = vweird.f32 %v452
        %vm460 = vweird.f32 %v453
        %vm461 = vmor %vm459, %vm460
        %v462 = vsel %vm461, %v453, %v458
        %v464 = vperm.slane %v462, 0
        %v466 = vmul.f32 %v430, %v464
        %s467 = sld [smem:[#allocation2 + $0x30]]
        %v468 = vstv %s467
        %v469 = vmul.f32 %v466, %v468
        %s470 = sld [smem:[#allocation2 + $0x34]]
        %v471 = vstv %s470
        %v472 = vadd.f32 %v469, %v471
        %v473 = vmul.f32 %v431, %v464
        %s474 = sld [smem:[#allocation2 + $0x31]]
        %v475 = vstv %s474
        %v476 = vmul.f32 %v473, %v475
        %s477 = sld [smem:[#allocation2 + $0x35]]
        %v478 = vstv %s477
        %v479 = vadd.f32 %v476, %v478
        %v480 = vmul.f32 %v432, %v464
        %s481 = sld [smem:[#allocation2 + $0x32]]
        %v482 = vstv %s481
        %v483 = vmul.f32 %v480, %v482
        %s484 = sld [smem:[#allocation2 + $0x36]]
        %v485 = vstv %s484
        %v486 = vadd.f32 %v483, %v485
        %v487 = vmul.f32 %v433, %v464
        %s488 = sld [smem:[#allocation2 + $0x33]]
        %v489 = vstv %s488
        %v490 = vmul.f32 %v487, %v489
        %s491 = sld [smem:[#allocation2 + $0x37]]
        %v492 = vstv %s491
        %v493 = vadd.f32 %v490, %v492
        %v494 = vadd.f32 %v472, %v176
        %v495 = vmax.f32 %v494, 0.0
        %v496 = vlaneseq
        %vm497 = vcmp.ge.s32.totalorder %v496, 0
        %vm498 = vcmp.lt.s32.totalorder %v496, 256
        %vm499 = vmand %vm497, %vm498
        %500 = vst.msk [vmem:[%s175] ss:$4 sm:$0x3] %vm499, %v495
        %v501 = vadd.f32 %v479, %v178
        %v502 = vmax.f32 %v501, 0.0
        %s503 = scalar_lea.vmem %s175, 1 [#allocation7]
        %504 = vst.msk [vmem:[%s503] ss:$4 sm:$0x3] %vm499, %v502
        %v505 = vadd.f32 %v486, %v180
        %v506 = vmax.f32 %v505, 0.0
        %s507 = scalar_lea.vmem %s175, 2 [#allocation7]
        %508 = vst.msk [vmem:[%s507] ss:$4 sm:$0x3] %vm499, %v506
        %v509 = vadd.f32 %v493, %v182
        %v510 = vmax.f32 %v509, 0.0
        %s511 = scalar_lea.vmem %s175, 3 [#allocation7]
        %512 = vst.msk [vmem:[%s511] ss:$4 sm:$0x3] %vm499, %v510
        %s513 = sand.u32 %s75, 1
        %s514 = scalar_lea.sflag [#allocation4], %s513
        %s515 = sand.u32 %s75, 1
        %s516 = smul.addr %s515, 8
        %s517 = scalar_lea.vmem [#allocation7], %s516
        // Predicated region
        $region37: #{tpu_custom_call.1} parent=27 // pred_check
          %p518 = pneg %p85
        $region38: #{tpu_custom_call.1} parent=27 // pred_check_branch
          %520 = sbr.rel (%p518) target = $region40
        $region39: #{tpu_custom_call.1} parent=27 // pred_region
          %522 = vsyncadd %s514, 0
          %s523 = smul.addr %s20, 2
          %s524 = smul.addr %s523, 4
          %s525 = scalar_lea.hbm %s2, %s524
          %s527 = sshll.u32 %s517, 4
          %s528 = int_to_ptr.vmem [resolvable:$true] %s527
          %s529 = sshll.u32 %s525, 4
          %s530 = int_to_ptr.hbm [resolvable:$true] %s529
          %532 = dma.vmem_to_hbm [thread:$0]  %s528, 128, %s530, %s514
        $region40: #{tpu_custom_call.1} parent=27 // pred_fallthru
          _
      $region28: #{tpu_custom_call.1} parent=5 // pred_fallthru
        _
      %p533 = scmp.le.s32.totalorder 2, %s15
      // Predicated region
      $region41: #{tpu_custom_call.1} parent=5 // pred_check
        %p534 = pneg %p533
      $region42: #{tpu_custom_call.1} parent=5 // pred_check_branch
        %536 = sbr.rel (%p534) target = $region44
      $region43: #{tpu_custom_call.1} parent=5 // pred_region
        %s537 = ssub.s32 %s15, 2
        // Predicated region
        $region45: #{tpu_custom_call.1} parent=43 // pred_check
          %p538 = pneg %p91
        $region46: #{tpu_custom_call.1} parent=43 // pred_check_branch
          %540 = sbr.rel (%p538) target = $region48
        $region47: #{tpu_custom_call.1} parent=43 // pred_region
          %s541 = sand.u32 %s76, 1
          %s542 = scalar_lea.sflag [#allocation4], %s541
          %s543 = sand.u32 %s76, 1
          %s544 = smul.addr %s543, 8
          %s545 = scalar_lea.vmem [#allocation7], %s544
          %547 = dma.done %s542, 128
        $region48: #{tpu_custom_call.1} parent=43 // pred_fallthru
          _
      $region44: #{tpu_custom_call.1} parent=5 // pred_fallthru
        _
    $region6: #{tpu_custom_call.1} parent=1 // loop_footer
      %s19 = sadd.s32 1, %s15
    $region7: #{tpu_custom_call.1} parent=1 // loop_footer_branch
      %14 = sbr.rel target = $region3
    $region8: #{tpu_custom_call.1} parent=1 // loop_exit
      _
    %548 = vsyncpa [#allocation3], 1
    %s549 = scalar_lea.sflag [#allocation3], 1
    %550 = vsyncpa %s549, 1
    %551 = vsyncpa [#allocation4], 1
    %s552 = scalar_lea.sflag [#allocation4], 1
    %553 = vsyncpa %s552, 1
    %554 = vsyncpa [#allocation5], 1
    %s555 = scalar_lea.sflag [#allocation5], 1
    %556 = vsyncpa %s555, 1

</llo_original>
